<compile_context>
chip_gen: v7x
topology: tpu7x:2x2x1
jax: 0.10.0
libtpu: 0.0.40
codegen_flags: <defaults>
</compile_context>

<pallas_src>
import functools

import jax
import jax.numpy as jnp
from jax.experimental import pallas as pl
from jax.experimental.pallas import tpu as pltpu


_MAX_TILE_ROWS = 128   # keeps the per-slot DMA-semaphore count modest (2 * 128)


def _vmem_limit_bytes():
    """Scoped-VMEM limit ~3/4 of physical per-core VMEM (v7x 64 MiB -> 48 MiB,
    v5e/v6e 128 MiB -> 96 MiB); conservative fallback if the query fails."""
    try:
        cap = int(pltpu.get_tpu_info().vmem_capacity_bytes)
    except Exception:
        cap = 64 * 1024 * 1024
    return max(32 * 1024 * 1024, min(cap * 3 // 4, 100 * 1024 * 1024))


def _pick_tile_rows(n_rows, vocab, itemsize, budget_bytes):
    """Largest row tile (multiple of 8, <= _MAX_TILE_ROWS) whose working set
    (double-buffered gather buffer: 2*itemsize B/elem, plus ~8 B/elem of strip-mined
    f32/i32 intermediates) fits the VMEM budget."""
    per_row = vocab * (2 * itemsize + 8)
    t = budget_bytes // per_row
    t = int(max(8, min(_MAX_TILE_ROWS, (t // 8) * 8)))
    t = min(t, max(8, ((n_rows + 7) // 8) * 8))
    return t


def _ce_gather_kernel(nvalid_ref, rowidx_ref,   # scalar-prefetch refs (SMEM)
                      labels_ref,               # (TILE, 1) int32, compacted labels
                      logits_hbm,               # (N, V) logits left in HBM (pl.ANY)
                      loss_ref, cnt_ref,        # (1, 8, 128) f32 resident accumulators
                      buf, sems,                # VMEM (2, TILE, V), DMA sems (2, TILE)
                      *, tile_rows, num_parallel):
    i = pl.program_id(0)
    j = pl.program_id(1)
    steps = pl.num_programs(1)
    nv = nvalid_ref[0]

    def rows_in(tile_id):
        # compacted valid rows occupy slots [0, nv); this tile owns slots
        # [tile_id*tile_rows, tile_id*tile_rows + tile_rows)
        return jnp.clip(nv - tile_id * tile_rows, 0, tile_rows)

    def issue(tile_id, slot):
        base = tile_id * tile_rows

        @pl.loop(0, rows_in(tile_id))
        def _(r):
            src_row = rowidx_ref[base + r]
            pltpu.make_async_copy(
                logits_hbm.at[pl.ds(src_row, 1), :],
                buf.at[slot, pl.ds(r, 1), :],
                sems.at[slot, r],
            ).start()

    def wait_tile(tile_id, slot):
        @pl.loop(0, rows_in(tile_id))
        def _(r):
            pltpu.make_async_copy(
                logits_hbm.at[pl.ds(0, 1), :],      # src irrelevant for wait; sizes match
                buf.at[slot, pl.ds(r, 1), :],
                sems.at[slot, r],
            ).wait()

    # Interleave tiles across the parallel axis so both TensorCores get valid tiles.
    t = j * num_parallel + i
    slot = j % 2

    @pl.when(j == 0)
    def _():
        loss_ref[...] = jnp.zeros_like(loss_ref)
        cnt_ref[...] = jnp.zeros_like(cnt_ref)
        issue(t, slot)                                   # prime the pipeline

    @pl.when(j + 1 < steps)
    def _():
        issue((j + 1) * num_parallel + i, (j + 1) % 2)   # prefetch next tile

    wait_tile(t, slot)

    @pl.when(rows_in(t) > 0)
    def _():
        raw = buf[slot]                                  # (TILE, V), input dtype
        labels = labels_ref[...]                         # (TILE, 1) int32

        # Single-consumer chains over the (TILE, V) tile (no shared `shifted` temp):
        m = jnp.max(raw, axis=-1, keepdims=True).astype(jnp.float32)
        sum_exp = jnp.sum(jnp.exp(raw.astype(jnp.float32) - m), axis=-1, keepdims=True)
        col = jax.lax.broadcasted_iota(jnp.int32, raw.shape, 1)
        label_logit = jnp.sum(
            jnp.where(col == labels, raw, 0).astype(jnp.float32),
            axis=-1, keepdims=True)

        valid = labels != -1                 # masks the compaction-padding rows (garbage buf)
        per_row = jnp.where(valid, m + jnp.log(sum_exp) - label_logit, 0.0)

        # Scalar partial sums broadcast over the lane-dense (1, 8, 128) accumulator block.
        loss_ref[...] += jnp.sum(per_row)
        cnt_ref[...] += jnp.sum(valid.astype(jnp.float32))


def _ce_sum_count_pallas(logits, labels):
    """Returns (sum of per-row CE losses over rows with label != -1, count of such rows).
    Only those rows' logits are DMA'd from HBM."""
    n, v = logits.shape
    itemsize = jnp.dtype(logits.dtype).itemsize
    vmem_limit = _vmem_limit_bytes()
    tile_rows = _pick_tile_rows(n, v, itemsize, vmem_limit - 4 * 1024 * 1024)

    labels = labels.reshape(-1).astype(jnp.int32)
    valid = labels != -1
    n_valid = jnp.sum(valid.astype(jnp.int32)).reshape(1)
    # Stable compaction: valid row indices first, ignored rows after.
    order = jnp.argsort(jnp.where(valid, 0, 1).astype(jnp.int32), stable=True)
    row_idx = order.astype(jnp.int32)
    compact_labels = labels[order]           # first n_valid entries != -1, the rest are -1

    n_tiles = pl.cdiv(n, tile_rows)
    num_parallel = 2 if n_tiles >= 2 else 1
    n_tiles = pl.cdiv(n_tiles, num_parallel) * num_parallel   # guarantee the 2-core split
    steps = n_tiles // num_parallel
    n_pad = n_tiles * tile_rows

    pad = n_pad - n
    if pad:
        row_idx = jnp.pad(row_idx, (0, pad))                           # in-range dummy rows
        compact_labels = jnp.pad(compact_labels, (0, pad), constant_values=-1)
    compact_labels = compact_labels.reshape(n_pad, 1)

    kernel = functools.partial(_ce_gather_kernel, tile_rows=tile_rows,
                               num_parallel=num_parallel)

    loss_sum, cnt = pl.pallas_call(
        kernel,
        out_shape=(
            jax.ShapeDtypeStruct((num_parallel, 8, 128), jnp.float32),
            jax.ShapeDtypeStruct((num_parallel, 8, 128), jnp.float32),
        ),
        grid_spec=pltpu.PrefetchScalarGridSpec(
            num_scalar_prefetch=2,
            grid=(num_parallel, steps),
            in_specs=[
                pl.BlockSpec((tile_rows, 1),
                             lambda i, j, nv, ridx: (j * num_parallel + i, 0)),
                pl.BlockSpec(memory_space=pl.ANY),        # logits stay in HBM; gathered
            ],
            out_specs=(
                pl.BlockSpec((1, 8, 128), lambda i, j, nv, ridx: (i, 0, 0)),
                pl.BlockSpec((1, 8, 128), lambda i, j, nv, ridx: (i, 0, 0)),
            ),
            scratch_shapes=[
                pltpu.VMEM((2, tile_rows, v), logits.dtype),     # double-buffered gather tile
                pltpu.SemaphoreType.DMA((2, tile_rows)),         # one sem per row per slot
            ],
        ),
        compiler_params=pltpu.CompilerParams(
            dimension_semantics=("parallel", "arbitrary"),
            vmem_limit_bytes=vmem_limit,
        ),
    )(n_valid, row_idx, compact_labels, logits)
    return jnp.sum(loss_sum[:, 0, 0]), jnp.sum(cnt[:, 0, 0])


def _ce_mean_ref(logits, labels):
    """Plain-JAX CrossEntropyLoss(ignore_index=-1, reduction='mean')."""
    logits = logits.astype(jnp.float32)
    labels = labels.astype(jnp.int32)
    valid = labels != -1
    logp = jax.nn.log_softmax(logits, axis=-1)
    safe = jnp.where(valid, labels, 0)
    picked = jnp.take_along_axis(logp, safe[:, None], axis=-1)[:, 0]
    return jnp.sum(jnp.where(valid, -picked, 0.0)) / jnp.sum(valid)


def bert_pretraining_criterion(
    prediction_scores,          # (B, S, V) float32 or bfloat16
    seq_relationship_score,     # (B, 2)
    masked_lm_labels,           # (B, S)    int, -1 = ignore
    next_sentence_labels=None,  # (B,)      int, -1 = ignore
    *,
    vocab_size,
    nsp=True,
):
    # TODO(synk): sequence_output_is_dense=True path (pre-gathered prediction rows with a
    # dynamically-shaped label compaction at the module interface) is not implemented; this
    # is the default dense=False path.
    v = prediction_scores.shape[-1]
    assert v == vocab_size
    mlm_logits = prediction_scores.reshape(-1, v)
    mlm_labels = masked_lm_labels.reshape(-1)

    mlm_sum, mlm_cnt = _ce_sum_count_pallas(mlm_logits, mlm_labels)
    mlm_loss = mlm_sum / mlm_cnt    # NaN if no valid labels (torch ignore_index behavior)

    if not nsp:
        return mlm_loss

    # NSP logits are (B, 2): trivially small, plain JAX (XLA fuses it) beats a kernel launch.
    nsp_loss = _ce_mean_ref(
        seq_relationship_score.reshape(-1, 2), next_sentence_labels.reshape(-1)
    )
    return mlm_loss + nsp_loss


if __name__ == "__main__":
    B, S, V = 2, 8, 512

    key = jax.random.PRNGKey(0)
    k1, k2, k3, k4, k5 = jax.random.split(key, 5)

    prediction_scores = jax.random.normal(k1, (B, S, V), dtype=jnp.float32)
    seq_relationship_score = jax.random.normal(k2, (B, 2), dtype=jnp.float32)

    # masked LM labels: mostly -1 (ignored), a few real vocab ids
    mlm_labels = jax.random.randint(k3, (B, S), 0, V, dtype=jnp.int32)
    ignore_mask = jax.random.bernoulli(k4, p=0.7, shape=(B, S))
    masked_lm_labels = jnp.where(ignore_mask, -1, mlm_labels).astype(jnp.int32)

    next_sentence_labels = jax.random.randint(k5, (B,), 0, 2, dtype=jnp.int32)

    total_loss = bert_pretraining_criterion(
        prediction_scores,
        seq_relationship_score,
        masked_lm_labels,
        next_sentence_labels,
        vocab_size=V,
        nsp=True,
    )
    total_loss = jax.block_until_ready(total_loss)

    # reference check (plain JAX)
    ref = _ce_mean_ref(prediction_scores.reshape(B * S, V),
                       masked_lm_labels.reshape(B * S)) + \
          _ce_mean_ref(seq_relationship_score, next_sentence_labels)
    assert jnp.allclose(total_loss, ref, rtol=1e-5, atol=1e-5), (total_loss, ref)

    print("KERNEL_OK")
</pallas_src>

<mosaic_0001>
module attributes {stable_mosaic.version = 11 : i64} {
  func.func @_ce_gather_kernel(%arg0: i32, %arg1: i32, %arg2: memref<1xi32, #tpu.memory_space<smem>>, %arg3: memref<16xi32, #tpu.memory_space<smem>>, %arg4: memref<16x1xi32, #tpu.memory_space<vmem>>, %arg5: memref<16x512xf32, #tpu.memory_space<any>>, %arg6: memref<1x8x128xf32, #tpu.memory_space<vmem>>, %arg7: memref<1x8x128xf32, #tpu.memory_space<vmem>>, %arg8: memref<2x16x512xf32, #tpu.memory_space<vmem>>, %arg9: memref<2x16x!tpu.dma_semaphore, #tpu.memory_space<semaphore_mem>>) attributes {dimension_semantics = [#tpu.dimension_semantics<parallel>, #tpu.dimension_semantics<arbitrary>], iteration_bounds = array<i64: 1, 1>, scalar_prefetch = 2 : i64, scratch_operands = 2 : i64, tpu.core_type = #tpu.core_type<tc>, window_params = [{transform_indices = @transform_0, window_bounds = array<i64: 16, 1>}, {}, {transform_indices = @transform_2, window_bounds = array<i64: 1, 8, 128>}, {transform_indices = @transform_3, window_bounds = array<i64: 1, 8, 128>}]} {
    %c0 = arith.constant 0 : index
    %0 = memref.load %arg2[%c0] : memref<1xi32, #tpu.memory_space<smem>>
    %c1_i32 = arith.constant 1 : i32
    %1 = arith.muli %arg1, %c1_i32 : i32
    %2 = arith.addi %1, %arg0 : i32
    %c2_i32 = arith.constant 2 : i32
    %c0_i32 = arith.constant 0 : i32
    %3 = arith.cmpi eq, %c2_i32, %c0_i32 : i32
    %c1_i32_0 = arith.constant 1 : i32
    %4 = arith.select %3, %c1_i32_0, %c2_i32 : i32
    %5 = arith.remsi %arg1, %4 : i32
    %c0_i32_1 = arith.constant 0 : i32
    %6 = arith.cmpi ne, %5, %c0_i32_1 : i32
    %c0_i32_2 = arith.constant 0 : i32
    %7 = arith.cmpi slt, %5, %c0_i32_2 : i32
    %c0_i32_3 = arith.constant 0 : i32
    %8 = arith.cmpi slt, %4, %c0_i32_3 : i32
    %9 = arith.xori %7, %8 : i1
    %10 = arith.andi %9, %6 : i1
    %11 = arith.addi %5, %4 : i32
    %12 = arith.select %10, %11, %5 : i32
    %c0_i32_4 = arith.constant 0 : i32
    %13 = arith.cmpi eq, %arg1, %c0_i32_4 : i32
    %14 = arith.extui %13 : i1 to i32
    %c0_i32_5 = arith.constant 0 : i32
    %15 = arith.cmpi ne, %14, %c0_i32_5 : i32
    scf.if %15 {
      %cst = arith.constant 0.000000e+00 : f32
      %37 = vector.broadcast %cst : f32 to vector<1x8x128xf32>
      %c0_24 = arith.constant 0 : index
      %c0_25 = arith.constant 0 : index
      %c0_26 = arith.constant 0 : index
      %38 = vector.load %arg6[%c0_24, %c0_25, %c0_26] : memref<1x8x128xf32, #tpu.memory_space<vmem>>, vector<1x8x128xf32>
      tpu.vector_store %arg6[%c0_24, %c0_25, %c0_26], %37 {strides = array<i32>} : memref<1x8x128xf32, #tpu.memory_space<vmem>>, vector<1x8x128xf32>,
      %cst_27 = arith.constant 0.000000e+00 : f32
      %39 = vector.broadcast %cst_27 : f32 to vector<1x8x128xf32>
      %c0_28 = arith.constant 0 : index
      %c0_29 = arith.constant 0 : index
      %c0_30 = arith.constant 0 : index
      %40 = vector.load %arg7[%c0_28, %c0_29, %c0_30] : memref<1x8x128xf32, #tpu.memory_space<vmem>>, vector<1x8x128xf32>
      tpu.vector_store %arg7[%c0_28, %c0_29, %c0_30], %39 {strides = array<i32>} : memref<1x8x128xf32, #tpu.memory_space<vmem>>, vector<1x8x128xf32>,
      %c16_i32_31 = arith.constant 16 : i32
      %41 = arith.muli %2, %c16_i32_31 : i32
      %c16_i32_32 = arith.constant 16 : i32
      %42 = arith.muli %2, %c16_i32_32 : i32
      %43 = arith.subi %0, %42 : i32
      %c0_i32_33 = arith.constant 0 : i32
      %c16_i32_34 = arith.constant 16 : i32
      %44 = arith.maxsi %c0_i32_33, %43 : i32
      %45 = arith.minsi %c16_i32_34, %44 : i32
      %c0_i32_35 = arith.constant 0 : i32
      %46 = arith.subi %45, %c0_i32_35 : i32
      %c1_i32_36 = arith.constant 1 : i32
      %c1_i32_37 = arith.constant 1 : i32
      %47 = arith.subi %c1_i32_36, %c1_i32_37 : i32
      %48 = arith.addi %46, %47 : i32
      %c1_i32_38 = arith.constant 1 : i32
      %49 = arith.divsi %48, %c1_i32_38 : i32
      %c1_i32_39 = arith.constant 1 : i32
      %c0_i32_40 = arith.constant 0 : i32
      %c0_i32_41 = arith.constant 0 : i32
      %50 = arith.subi %49, %c0_i32_41 : i32
      %51 = arith.addi %c0_i32_41, %50 : i32
      %c1_i32_42 = arith.constant 1 : i32
      scf.for %arg10 = %c0_i32_41 to %51 step %c1_i32_42  : i32 {
        %52 = arith.muli %arg10, %c1_i32_39 : i32
        %53 = arith.addi %c0_i32_40, %52 : i32
        %54 = arith.addi %41, %53 : i32
        %55 = arith.index_cast %54 : i32 to index
        %56 = memref.load %arg3[%55] : memref<16xi32, #tpu.memory_space<smem>>
        %c0_i32_43 = arith.constant 0 : i32
        %57 = tpu.memref_slice %arg5[%56, %c0_i32_43] : memref<16x512xf32, #tpu.memory_space<any>> -> memref<1x512xf32, #tpu.memory_space<any>>
        %c0_i32_44 = arith.constant 0 : i32
        %58 = tpu.memref_slice %arg8[%12, %53, %c0_i32_44] : memref<2x16x512xf32, #tpu.memory_space<vmem>> -> memref<1x1x512xf32, #tpu.memory_space<vmem>>
        %59 = tpu.memref_squeeze %58 : memref<1x1x512xf32, #tpu.memory_space<vmem>> -> memref<1x512xf32, #tpu.memory_space<vmem>>
        %60 = tpu.memref_slice %arg9[%12, %53] : memref<2x16x!tpu.dma_semaphore, #tpu.memory_space<semaphore_mem>> -> memref<1x1x!tpu.dma_semaphore, #tpu.memory_space<semaphore_mem>>
        %61 = tpu.memref_squeeze %60 : memref<1x1x!tpu.dma_semaphore, #tpu.memory_space<semaphore_mem>> -> memref<!tpu.dma_semaphore, #tpu.memory_space<semaphore_mem>>
        tpu.enqueue_dma source(%57 : memref<1x512xf32, #tpu.memory_space<any>>) target(%59 : memref<1x512xf32, #tpu.memory_space<vmem>>) target_semaphore(%61 : memref<!tpu.dma_semaphore, #tpu.memory_space<semaphore_mem>>)
      }
    } else {
    }
    %c1_i32_6 = arith.constant 1 : i32
    %16 = arith.addi %arg1, %c1_i32_6 : i32
    %c1_i32_7 = arith.constant 1 : i32
    %17 = arith.cmpi slt, %16, %c1_i32_7 : i32
    %18 = arith.extui %17 : i1 to i32
    %c0_i32_8 = arith.constant 0 : i32
    %19 = arith.cmpi ne, %18, %c0_i32_8 : i32
    scf.if %19 {
      %c1_i32_24 = arith.constant 1 : i32
      %37 = arith.addi %arg1, %c1_i32_24 : i32
      %c1_i32_25 = arith.constant 1 : i32
      %38 = arith.muli %37, %c1_i32_25 : i32
      %39 = arith.addi %38, %arg0 : i32
      %c1_i32_26 = arith.constant 1 : i32
      %40 = arith.addi %arg1, %c1_i32_26 : i32
      %c2_i32_27 = arith.constant 2 : i32
      %c0_i32_28 = arith.constant 0 : i32
      %41 = arith.cmpi eq, %c2_i32_27, %c0_i32_28 : i32
      %c1_i32_29 = arith.constant 1 : i32
      %42 = arith.select %41, %c1_i32_29, %c2_i32_27 : i32
      %43 = arith.remsi %40, %42 : i32
      %c0_i32_30 = arith.constant 0 : i32
      %44 = arith.cmpi ne, %43, %c0_i32_30 : i32
      %c0_i32_31 = arith.constant 0 : i32
      %45 = arith.cmpi slt, %43, %c0_i32_31 : i32
      %c0_i32_32 = arith.constant 0 : i32
      %46 = arith.cmpi slt, %42, %c0_i32_32 : i32
      %47 = arith.xori %45, %46 : i1
      %48 = arith.andi %47, %44 : i1
      %49 = arith.addi %43, %42 : i32
      %50 = arith.select %48, %49, %43 : i32
      %c16_i32_33 = arith.constant 16 : i32
      %51 = arith.muli %39, %c16_i32_33 : i32
      %c16_i32_34 = arith.constant 16 : i32
      %52 = arith.muli %39, %c16_i32_34 : i32
      %53 = arith.subi %0, %52 : i32
      %c0_i32_35 = arith.constant 0 : i32
      %c16_i32_36 = arith.constant 16 : i32
      %54 = arith.maxsi %c0_i32_35, %53 : i32
      %55 = arith.minsi %c16_i32_36, %54 : i32
      %c0_i32_37 = arith.constant 0 : i32
      %56 = arith.subi %55, %c0_i32_37 : i32
      %c1_i32_38 = arith.constant 1 : i32
      %c1_i32_39 = arith.constant 1 : i32
      %57 = arith.subi %c1_i32_38, %c1_i32_39 : i32
      %58 = arith.addi %56, %57 : i32
      %c1_i32_40 = arith.constant 1 : i32
      %59 = arith.divsi %58, %c1_i32_40 : i32
      %c1_i32_41 = arith.constant 1 : i32
      %c0_i32_42 = arith.constant 0 : i32
      %c0_i32_43 = arith.constant 0 : i32
      %60 = arith.subi %59, %c0_i32_43 : i32
      %61 = arith.addi %c0_i32_43, %60 : i32
      %c1_i32_44 = arith.constant 1 : i32
      scf.for %arg10 = %c0_i32_43 to %61 step %c1_i32_44  : i32 {
        %62 = arith.muli %arg10, %c1_i32_41 : i32
        %63 = arith.addi %c0_i32_42, %62 : i32
        %64 = arith.addi %51, %63 : i32
        %65 = arith.index_cast %64 : i32 to index
        %66 = memref.load %arg3[%65] : memref<16xi32, #tpu.memory_space<smem>>
        %c0_i32_45 = arith.constant 0 : i32
        %67 = tpu.memref_slice %arg5[%66, %c0_i32_45] : memref<16x512xf32, #tpu.memory_space<any>> -> memref<1x512xf32, #tpu.memory_space<any>>
        %c0_i32_46 = arith.constant 0 : i32
        %68 = tpu.memref_slice %arg8[%50, %63, %c0_i32_46] : memref<2x16x512xf32, #tpu.memory_space<vmem>> -> memref<1x1x512xf32, #tpu.memory_space<vmem>>
        %69 = tpu.memref_squeeze %68 : memref<1x1x512xf32, #tpu.memory_space<vmem>> -> memref<1x512xf32, #tpu.memory_space<vmem>>
        %70 = tpu.memref_slice %arg9[%50, %63] : memref<2x16x!tpu.dma_semaphore, #tpu.memory_space<semaphore_mem>> -> memref<1x1x!tpu.dma_semaphore, #tpu.memory_space<semaphore_mem>>
        %71 = tpu.memref_squeeze %70 : memref<1x1x!tpu.dma_semaphore, #tpu.memory_space<semaphore_mem>> -> memref<!tpu.dma_semaphore, #tpu.memory_space<semaphore_mem>>
        tpu.enqueue_dma source(%67 : memref<1x512xf32, #tpu.memory_space<any>>) target(%69 : memref<1x512xf32, #tpu.memory_space<vmem>>) target_semaphore(%71 : memref<!tpu.dma_semaphore, #tpu.memory_space<semaphore_mem>>)
      }
    } else {
    }
    %c16_i32 = arith.constant 16 : i32
    %20 = arith.muli %2, %c16_i32 : i32
    %21 = arith.subi %0, %20 : i32
    %c0_i32_9 = arith.constant 0 : i32
    %c16_i32_10 = arith.constant 16 : i32
    %22 = arith.maxsi %c0_i32_9, %21 : i32
    %23 = arith.minsi %c16_i32_10, %22 : i32
    %c0_i32_11 = arith.constant 0 : i32
    %24 = arith.subi %23, %c0_i32_11 : i32
    %c1_i32_12 = arith.constant 1 : i32
    %c1_i32_13 = arith.constant 1 : i32
    %25 = arith.subi %c1_i32_12, %c1_i32_13 : i32
    %26 = arith.addi %24, %25 : i32
    %c1_i32_14 = arith.constant 1 : i32
    %27 = arith.divsi %26, %c1_i32_14 : i32
    %c1_i32_15 = arith.constant 1 : i32
    %c0_i32_16 = arith.constant 0 : i32
    %c0_i32_17 = arith.constant 0 : i32
    %28 = arith.subi %27, %c0_i32_17 : i32
    %29 = arith.addi %c0_i32_17, %28 : i32
    %c1_i32_18 = arith.constant 1 : i32
    scf.for %arg10 = %c0_i32_17 to %29 step %c1_i32_18  : i32 {
      %37 = arith.muli %arg10, %c1_i32_15 : i32
      %38 = arith.addi %c0_i32_16, %37 : i32
      %c0_i32_24 = arith.constant 0 : i32
      %c0_i32_25 = arith.constant 0 : i32
      %39 = tpu.memref_slice %arg5[%c0_i32_24, %c0_i32_25] : memref<16x512xf32, #tpu.memory_space<any>> -> memref<1x512xf32, #tpu.memory_space<any>>
      %c0_i32_26 = arith.constant 0 : i32
      %40 = tpu.memref_slice %arg8[%12, %38, %c0_i32_26] : memref<2x16x512xf32, #tpu.memory_space<vmem>> -> memref<1x1x512xf32, #tpu.memory_space<vmem>>
      %41 = tpu.memref_squeeze %40 : memref<1x1x512xf32, #tpu.memory_space<vmem>> -> memref<1x512xf32, #tpu.memory_space<vmem>>
      %42 = tpu.memref_slice %arg9[%12, %38] : memref<2x16x!tpu.dma_semaphore, #tpu.memory_space<semaphore_mem>> -> memref<1x1x!tpu.dma_semaphore, #tpu.memory_space<semaphore_mem>>
      %43 = tpu.memref_squeeze %42 : memref<1x1x!tpu.dma_semaphore, #tpu.memory_space<semaphore_mem>> -> memref<!tpu.dma_semaphore, #tpu.memory_space<semaphore_mem>>
      tpu.wait_dma2 semaphore(%43 : memref<!tpu.dma_semaphore, #tpu.memory_space<semaphore_mem>>) src(%39 : memref<1x512xf32, #tpu.memory_space<any>>) dst(%41 : memref<1x512xf32, #tpu.memory_space<vmem>>)
    }
    %c16_i32_19 = arith.constant 16 : i32
    %30 = arith.muli %2, %c16_i32_19 : i32
    %31 = arith.subi %0, %30 : i32
    %c0_i32_20 = arith.constant 0 : i32
    %c16_i32_21 = arith.constant 16 : i32
    %32 = arith.maxsi %c0_i32_20, %31 : i32
    %33 = arith.minsi %c16_i32_21, %32 : i32
    %c0_i32_22 = arith.constant 0 : i32
    %34 = arith.cmpi sgt, %33, %c0_i32_22 : i32
    %35 = arith.extui %34 : i1 to i32
    %c0_i32_23 = arith.constant 0 : i32
    %36 = arith.cmpi ne, %35, %c0_i32_23 : i32
    scf.if %36 {
      %37 = arith.index_cast %12 : i32 to index
      %c0_24 = arith.constant 0 : index
      %c0_25 = arith.constant 0 : index
      %38 = vector.load %arg8[%37, %c0_24, %c0_25] : memref<2x16x512xf32, #tpu.memory_space<vmem>>, vector<1x16x512xf32>
      %39 = vector.shape_cast %38 : vector<1x16x512xf32> to vector<16x512xf32>
      %c0_26 = arith.constant 0 : index
      %c0_27 = arith.constant 0 : index
      %40 = vector.load %arg4[%c0_26, %c0_27] : memref<16x1xi32, #tpu.memory_space<vmem>>, vector<16x1xi32>
      %cst = arith.constant dense<0xFF800000> : vector<16xf32>
      %41 = vector.multi_reduction <maximumf>, %39, %cst [1] : vector<16x512xf32> to vector<16xf32>
      %42 = vector.shape_cast %41 : vector<16xf32> to vector<16x1xf32>
      %43 = vector.broadcast %42 : vector<16x1xf32> to vector<16x512xf32>
      %44 = arith.subf %39, %43 : vector<16x512xf32>
      %45 = math.exp %44 : vector<16x512xf32>
      %cst_28 = arith.constant dense<0.000000e+00> : vector<16xf32>
      %46 = vector.multi_reduction <add>, %45, %cst_28 [1] : vector<16x512xf32> to vector<16xf32>
      %47 = vector.shape_cast %46 : vector<16xf32> to vector<16x1xf32>
      %48 = tpu.iota {dimensions = array<i32: 1>} : vector<16x512xi32>
      %49 = vector.broadcast %40 : vector<16x1xi32> to vector<16x512xi32>
      %50 = arith.cmpi eq, %48, %49 : vector<16x512xi32>
      %c0_i32_29 = arith.constant 0 : i32
      %51 = arith.sitofp %c0_i32_29 : i32 to f32
      %52 = vector.broadcast %51 : f32 to vector<16x512xf32>
      %53 = arith.select %50, %39, %52 : vector<16x512xi1>, vector<16x512xf32>
      %cst_30 = arith.constant dense<0.000000e+00> : vector<16xf32>
      %54 = vector.multi_reduction <add>, %53, %cst_30 [1] : vector<16x512xf32> to vector<16xf32>
      %55 = vector.shape_cast %54 : vector<16xf32> to vector<16x1xf32>
      %c-1_i32 = arith.constant -1 : i32
      %56 = vector.broadcast %c-1_i32 : i32 to vector<16x1xi32>
      %57 = arith.cmpi ne, %40, %56 : vector<16x1xi32>
      %58 = math.log %47 : vector<16x1xf32>
      %59 = arith.addf %42, %58 : vector<16x1xf32>
      %60 = arith.subf %59, %55 : vector<16x1xf32>
      %cst_31 = arith.constant 0.000000e+00 : f32
      %61 = vector.broadcast %cst_31 : f32 to vector<16x1xf32>
      %62 = arith.select %57, %60, %61 : vector<16x1xi1>, vector<16x1xf32>
      %c0_32 = arith.constant 0 : index
      %c0_33 = arith.constant 0 : index
      %c0_34 = arith.constant 0 : index
      %63 = vector.load %arg6[%c0_32, %c0_33, %c0_34] : memref<1x8x128xf32, #tpu.memory_space<vmem>>, vector<1x8x128xf32>
      %64 = vector.shape_cast %62 : vector<16x1xf32> to vector<1x16x1xf32>
      %cst_35 = arith.constant dense<0.000000e+00> : vector<1xf32>
      %65 = vector.multi_reduction <add>, %64, %cst_35 [1, 2] : vector<1x16x1xf32> to vector<1xf32>
      %66 = vector.shape_cast %65 : vector<1xf32> to vector<1x1x1xf32>
      %67 = vector.extract %66[0, 0, 0] : f32 from vector<1x1x1xf32>
      %68 = vector.broadcast %67 : f32 to vector<1x8x128xf32>
      %69 = arith.addf %63, %68 : vector<1x8x128xf32>
      %c0_36 = arith.constant 0 : index
      %c0_37 = arith.constant 0 : index
      %c0_38 = arith.constant 0 : index
      %70 = vector.load %arg6[%c0_36, %c0_37, %c0_38] : memref<1x8x128xf32, #tpu.memory_space<vmem>>, vector<1x8x128xf32>
      tpu.vector_store %arg6[%c0_36, %c0_37, %c0_38], %69 {strides = array<i32>} : memref<1x8x128xf32, #tpu.memory_space<vmem>>, vector<1x8x128xf32>,
      %c0_39 = arith.constant 0 : index
      %c0_40 = arith.constant 0 : index
      %c0_41 = arith.constant 0 : index
      %71 = vector.load %arg7[%c0_39, %c0_40, %c0_41] : memref<1x8x128xf32, #tpu.memory_space<vmem>>, vector<1x8x128xf32>
      %72 = arith.extui %57 : vector<16x1xi1> to vector<16x1xi32>
      %73 = arith.sitofp %72 : vector<16x1xi32> to vector<16x1xf32>
      %74 = vector.shape_cast %73 : vector<16x1xf32> to vector<1x16x1xf32>
      %cst_42 = arith.constant dense<0.000000e+00> : vector<1xf32>
      %75 = vector.multi_reduction <add>, %74, %cst_42 [1, 2] : vector<1x16x1xf32> to vector<1xf32>
      %76 = vector.shape_cast %75 : vector<1xf32> to vector<1x1x1xf32>
      %77 = vector.extract %76[0, 0, 0] : f32 from vector<1x1x1xf32>
      %78 = vector.broadcast %77 : f32 to vector<1x8x128xf32>
      %79 = arith.addf %71, %78 : vector<1x8x128xf32>
      %c0_43 = arith.constant 0 : index
      %c0_44 = arith.constant 0 : index
      %c0_45 = arith.constant 0 : index
      %80 = vector.load %arg7[%c0_43, %c0_44, %c0_45] : memref<1x8x128xf32, #tpu.memory_space<vmem>>, vector<1x8x128xf32>
      tpu.vector_store %arg7[%c0_43, %c0_44, %c0_45], %79 {strides = array<i32>} : memref<1x8x128xf32, #tpu.memory_space<vmem>>, vector<1x8x128xf32>,
    } else {
    }
    return
  }
  func.func @transform_0(%arg0: i32, %arg1: i32, %arg2: memref<1xi32, #tpu.memory_space<smem>>, %arg3: memref<16xi32, #tpu.memory_space<smem>>) -> (i32, i32) {
    %c1_i32 = arith.constant 1 : i32
    %0 = arith.muli %arg1, %c1_i32 : i32
    %1 = arith.addi %0, %arg0 : i32
    %c0_i32 = arith.constant 0 : i32
    %c0_i32_0 = arith.constant 0 : i32
    return %1, %c0_i32 : i32, i32
  }
  func.func @transform_2(%arg0: i32, %arg1: i32, %arg2: memref<1xi32, #tpu.memory_space<smem>>, %arg3: memref<16xi32, #tpu.memory_space<smem>>) -> (i32, i32, i32) {
    %c0_i32 = arith.constant 0 : i32
    %c0_i32_0 = arith.constant 0 : i32
    %c0_i32_1 = arith.constant 0 : i32
    return %arg0, %c0_i32, %c0_i32_0 : i32, i32, i32
  }
  func.func @transform_3(%arg0: i32, %arg1: i32, %arg2: memref<1xi32, #tpu.memory_space<smem>>, %arg3: memref<16xi32, #tpu.memory_space<smem>>) -> (i32, i32, i32) {
    %c0_i32 = arith.constant 0 : i32
    %c0_i32_0 = arith.constant 0 : i32
    %c0_i32_1 = arith.constant 0 : i32
    return %arg0, %c0_i32, %c0_i32_0 : i32, i32, i32
  }
}

</mosaic_0001>

<llo_original>
// kernel: tpu_custom_call.1
$region0: #{tpu_custom_call.1}
  #allocation0 [shape = 'u32[]', space=smem, size = 0x4, offset = 0x4, fixed_abs, tag = 'smem constant byte address 0x4 - core index']
  #allocation1 [shape = 'u32[144,128]{1,0:T(1,128)}', space=vmem, size = 0x12000, scoped, tag = 'internal scratch']
  #allocation2 [shape = 'f32[2,16,512]{2,1,0:T(8,128)}', space=vmem, size = 0x10000, scoped, tag = 'scratch operand']
  #allocation3 [shape = 's32[32]{0}', space=sflag, size = 0x80, scoped, tag = 'scratch operand']
  #allocation4 [shape = 's32[1]{0}', space=sflag, size = 0x4, scoped, tag = 'scoped memory for tpu_custom_call.1']
  #allocation5 [shape = 's32[1]{0:T(128)S(6)}', space=smem, size = 0x200, scoped, tag = 'prefetched SMEM operand 0']
  #allocation6 [shape = 'u8[512]{0}', space=smem, size = 0x200, scoped, tag = 'prefetched SMEM operand 1']
  #allocation11 [shape = 's32[]', space=sflag, size = 0x4, offset = 0, fixed_abs, tag = 'sflag constant byte address 0x0 - dummy sync flag']
  #allocation12 [shape = 's32[]', space=sflag, size = 0x4, offset = 0, fixed_abs, tag = 'sflag constant byte address 0x0 - dummy sync flag']
  %s0 = inlined_call_operand.<no memory space> [shape: s32[1], index: 0, kind: input, shape index: {}]
  %s1 = inlined_call_operand.vmem [shape: s32[16], index: 1, kind: input, shape index: {}]
  %s2 = inlined_call_operand.vmem [shape: s32[16,1], index: 2, kind: input, shape index: {}]
  %s3 = inlined_call_operand.hbm [shape: f32[16,512], index: 3, kind: input, shape index: {}]
  %s4 = inlined_call_operand.hbm [shape: f32[1,8,128], index: 4, kind: output, shape index: {0}]
  %s5 = inlined_call_operand.hbm [shape: f32[1,8,128], index: 5, kind: output, shape index: {1}]
  %6 = xla_tuple %s4, %s5
  %s7 = sld [smem:[#allocation0]]
  $region55: #{tpu_custom_call.1} parent=0
    _
  %s9 = ssub.s32 1, %s7
  %s10 = scalar_select 0, %s9, %s7
  %11 = sst [smem:[#allocation5]] %s0
  %s12 = sshll.u32 %s1, 4
  %s13 = int_to_ptr.vmem [resolvable:$true] %s12
  %15 = dma.vmem_to_smem %s13, 16, [#allocation6], [#allocation4]
  %16 = dma.done [#allocation4], 16
  %17 = sfence
  $region1: #{tpu_custom_call.1} parent=0
    #allocation7 [shape = 'u8[4096]{0}', space=vmem, size = 0x1000, scoped, tag = 'output window, operand 0, single buffered']
    #allocation8 [shape = 's32[1]{0}', space=sflag, size = 0x4, scoped, tag = 'scoped memory for tpu_custom_call.1']
    #allocation9 [shape = 'u8[4096]{0}', space=vmem, size = 0x1000, scoped, tag = 'output window, operand 1, single buffered']
    #allocation10 [shape = 's32[1]{0}', space=sflag, size = 0x4, scoped, tag = 'scoped memory for tpu_custom_call.1']
    %18 = vsyncpa [#allocation8], 0
    %19 = vsyncpa [#allocation10], 0
    // Predicated region
    $region2: #{tpu_custom_call.1} parent=1 // pred_check
      _
    $region3: #{tpu_custom_call.1} parent=1 // pred_check_branch
      %21 = sbr.rel (0) target = $region5
    $region4: #{tpu_custom_call.1} parent=1 // pred_region
      %s22 = sadd.s32 0, 0
      %s23 = smul.u32 2, %s22
      %p24 = scmp.lt.s32.totalorder %s23, 1
      %s25 = scalar_select %p24, %s23, 1
      %s26 = smul.addr %s25, 8
      %s27 = scalar_lea.vmem %s2, %s26
      %s28 = sadd.s32 0, 0
      %s29 = smul.u32 2, %s28
    $region5: #{tpu_custom_call.1} parent=1 // pred_fallthru
      _
    %s30 = sadd.s32 0, 0
    %s31 = smul.u32 2, %s30
    %p32 = scmp.lt.s32.totalorder %s31, 1
    %s33 = scalar_select %p32, %s31, 1
    %s34 = smul.addr %s33, 8
    %s35 = scalar_lea.vmem %s2, %s34
    %s36 = sadd.s32 0, 0
    %s37 = smul.u32 2, %s36
    %p38 = scmp.lt.s32.totalorder %s37, 1
    %s39 = scalar_select %p38, %s37, 1
    %s40 = smul.addr %s39, 8
    %s41 = scalar_lea.vmem %s2, %s40
    %s42 = sadd.s32 0, 0
    %s43 = smul.u32 2, %s42
    %s44 = sld [smem:[#allocation5]]
    %s45 = sadd.s32 0, 0
    %s46 = ssub.s32 0, 0
    %s47 = ssub.s32 0, 0
    %p48 = scmp.ne.s32.totalorder 0, 0
    %p49 = scmp.lt.s32.totalorder 0, 0
    %p50 = pnand %p49, %p48
    %p51 = pneg %p50
    %s52 = sadd.s32 0, 2
    %s53 = scalar_select %p51, %s52, 0
    %p54 = scmp.eq.s32.totalorder 0, 0
    // Predicated region
    $region6: #{tpu_custom_call.1} parent=1 // pred_check
      %p55 = pneg %p54
    $region7: #{tpu_custom_call.1} parent=1 // pred_check_branch
      %57 = sbr.rel (%p55) target = $region9
    $region8: #{tpu_custom_call.1} parent=1 // pred_region
      %58 = vst [vmem:[#allocation7] sm:$0xff] 0.0
      %59 = vst [vmem:[#allocation9] sm:$0xff] 0.0
      %s60 = smul.u32 %s45, 16
      %s61 = ssub.s32 %s44, %s60
      %p62 = scmp.gt.s32.totalorder %s61, 0
      %s63 = scalar_select %p62, %s61, 0
      %p64 = scmp.lt.s32.totalorder %s63, 16
      %s65 = scalar_select %p64, %s63, 16
      // While loop
      $region10: #{tpu_custom_call.1} parent=8 // loop_pre_header
        _
      $region11: #{tpu_custom_call.1} parent=8 // loop_header
        %s67 = sphi 0, %s69
        %p68 = scmp.ge.s32.totalorder %s67, %s65
      $region12: #{tpu_custom_call.1} parent=8 // loop_header_branch
        %71 = sbr.rel (%p68) target = $region16
      $region13: #{tpu_custom_call.1} parent=8 // loop_body
        %s72 = sadd.s32 %s60, %s67
        %s73 = sld [smem:[#allocation6 + %s72]]
        %s74 = sshrl.u32 %s73, 3
        %s75 = sand.u32 %s73, 7
        %s76 = smul.u32 %s74, 32
        %s77 = sadd.s32 %s75, %s76
        %s78 = smul.addr %s77, 16
        %s79 = scalar_lea.hbm %s3, %s78
        %s80 = sshrl.u32 %s67, 3
        %s81 = sand.u32 %s67, 7
        %s82 = smul.u32 %s80, 32
        %s83 = sadd.s32 %s81, %s82
        %s84 = smul.u32 %s53, 64
        %s85 = sadd.s32 %s83, %s84
        %s86 = scalar_lea.vmem [#allocation2], %s85
        %s87 = smul.u32 %s53, 16
        %s88 = sadd.s32 %s67, %s87
        %s89 = scalar_lea.sflag [#allocation3], %s88
        %s91 = sshll.u32 %s86, 4
        %s92 = int_to_ptr.vmem [resolvable:$true] %s91
        %94 = dma.hbm_to_vmem [thread:$0]  %s79, 64, %s92, %s89, 128, 128, 1
      $region14: #{tpu_custom_call.1} parent=8 // loop_footer
        %s69 = sadd.s32 %s67, 1
      $region15: #{tpu_custom_call.1} parent=8 // loop_footer_branch
        %66 = sbr.rel target = $region11
      $region16: #{tpu_custom_call.1} parent=8 // loop_exit
        _
    $region9: #{tpu_custom_call.1} parent=1 // pred_fallthru
      _
    %s95 = sadd.s32 0, 1
    %p96 = scmp.lt.s32.totalorder %s95, 1
    // Predicated region
    $region17: #{tpu_custom_call.1} parent=1 // pred_check
      %p97 = pneg %p96
    $region18: #{tpu_custom_call.1} parent=1 // pred_check_branch
      %99 = sbr.rel (%p97) target = $region20
    $region19: #{tpu_custom_call.1} parent=1 // pred_region
      %s100 = sadd.s32 %s95, 0
      %p101 = scmp.lt.s32.totalorder %s95, 0
      %s102 = ssub.s32 0, %s95
      %s103 = scalar_select %p101, %s102, %s95
      %s104 = sand.u32 %s103, 1
      %s105 = ssub.s32 0, %s104
      %s106 = scalar_select %p101, %s105, %s104
      %p107 = scmp.ne.s32.totalorder %s106, 0
      %p108 = scmp.lt.s32.totalorder %s106, 0
      %p109 = pnand %p108, %p107
      %p110 = pneg %p109
      %s111 = sadd.s32 %s106, 2
      %s112 = scalar_select %p110, %s111, %s106
      %s113 = smul.u32 %s100, 16
      %s114 = ssub.s32 %s44, %s113
      %p115 = scmp.gt.s32.totalorder %s114, 0
      %s116 = scalar_select %p115, %s114, 0
      %p117 = scmp.lt.s32.totalorder %s116, 16
      %s118 = scalar_select %p117, %s116, 16
      // While loop
      $region21: #{tpu_custom_call.1} parent=19 // loop_pre_header
        _
      $region22: #{tpu_custom_call.1} parent=19 // loop_header
        %s120 = sphi 0, %s122
        %p121 = scmp.ge.s32.totalorder %s120, %s118
      $region23: #{tpu_custom_call.1} parent=19 // loop_header_branch
        %124 = sbr.rel (%p121) target = $region27
      $region24: #{tpu_custom_call.1} parent=19 // loop_body
        %s125 = sadd.s32 %s113, %s120
        %s126 = sld [smem:[#allocation6 + %s125]]
        %s127 = sshrl.u32 %s126, 3
        %s128 = sand.u32 %s126, 7
        %s129 = smul.u32 %s127, 32
        %s130 = sadd.s32 %s128, %s129
        %s131 = smul.addr %s130, 16
        %s132 = scalar_lea.hbm %s3, %s131
        %s133 = sshrl.u32 %s120, 3
        %s134 = sand.u32 %s120, 7
        %s135 = smul.u32 %s133, 32
        %s136 = sadd.s32 %s134, %s135
        %s137 = smul.u32 %s112, 64
        %s138 = sadd.s32 %s136, %s137
        %s139 = scalar_lea.vmem [#allocation2], %s138
        %s140 = smul.u32 %s112, 16
        %s141 = sadd.s32 %s120, %s140
        %s142 = scalar_lea.sflag [#allocation3], %s141
        %s144 = sshll.u32 %s139, 4
        %s145 = int_to_ptr.vmem [resolvable:$true] %s144
        %147 = dma.hbm_to_vmem [thread:$0]  %s132, 64, %s145, %s142, 128, 128, 1
      $region25: #{tpu_custom_call.1} parent=19 // loop_footer
        %s122 = sadd.s32 %s120, 1
      $region26: #{tpu_custom_call.1} parent=19 // loop_footer_branch
        %119 = sbr.rel target = $region22
      $region27: #{tpu_custom_call.1} parent=19 // loop_exit
        _
    $region20: #{tpu_custom_call.1} parent=1 // pred_fallthru
      _
    %s148 = smul.u32 %s45, 16
    %s149 = ssub.s32 %s44, %s148
    %p150 = scmp.gt.s32.totalorder %s149, 0
    %s151 = scalar_select %p150, %s149, 0
    %p152 = scmp.lt.s32.totalorder %s151, 16
    %s153 = scalar_select %p152, %s151, 16
    // While loop
    $region28: #{tpu_custom_call.1} parent=1 // loop_pre_header
      _
    $region29: #{tpu_custom_call.1} parent=1 // loop_header
      %s155 = sphi 0, %s157
      %p156 = scmp.ge.s32.totalorder %s155, %s153
    $region30: #{tpu_custom_call.1} parent=1 // loop_header_branch
      %159 = sbr.rel (%p156) target = $region34
    $region31: #{tpu_custom_call.1} parent=1 // loop_body
      %s160 = smul.u32 %s53, 16
      %s161 = sadd.s32 %s155, %s160
      %s162 = scalar_lea.sflag [#allocation3], %s161
      %s163 = smul.u32 1, 4
      %s164 = sshll.u32 %s163, 4
      %165 = dma.done %s162, %s164
    $region32: #{tpu_custom_call.1} parent=1 // loop_footer
      %s157 = sadd.s32 %s155, 1
    $region33: #{tpu_custom_call.1} parent=1 // loop_footer_branch
      %154 = sbr.rel target = $region29
    $region34: #{tpu_custom_call.1} parent=1 // loop_exit
      _
    %p166 = scmp.gt.s32.totalorder %s153, 0
    // Predicated region
    $region35: #{tpu_custom_call.1} parent=1 // pred_check
      %p167 = pneg %p166
    $region36: #{tpu_custom_call.1} parent=1 // pred_check_branch
      %169 = sbr.rel (%p167) target = $region38
    $region37: #{tpu_custom_call.1} parent=1 // pred_region
      %s170 = smul.u32 %s53, 8
      %s171 = smul.addr %s170, 8
      %s172 = scalar_lea.vmem [#allocation2], %s171
      %v173 = vld [vmem:[%s172] sm:$0xff]
      %v174 = vld [vmem:[%s172 + $0x8] sm:$0xff]
      %v175 = vld [vmem:[%s172 + $0x10] sm:$0xff]
      %v176 = vld [vmem:[%s172 + $0x18] sm:$0xff]
      %v177 = vld [vmem:[%s172 + $0x20] sm:$0xff]
      %v178 = vld [vmem:[%s172 + $0x28] sm:$0xff]
      %v179 = vld [vmem:[%s172 + $0x30] sm:$0xff]
      %v180 = vld [vmem:[%s172 + $0x38] sm:$0xff]
      %v181 = vld [vmem:[%s41] sm:$0xff]
      %v182 = vld [vmem:[%s41 + $0x8] sm:$0xff]
      %v183 = vmax.f32 %v173, %v175
      %v184 = vmax.f32 %v174, %v176
      %v185 = vmax.f32 %v183, %v184
      %186 = vmax.xlane.f32.xlu0 %v185
      %v187 = vpop.xlane.xlu0 %186
      %v188 = vmax.f32 %v177, %v179
      %v189 = vmax.f32 %v178, %v180
      %v190 = vmax.f32 %v188, %v189
      %191 = vmax.xlane.f32.xlu0 %v190
      %v192 = vpop.xlane.xlu0 %191
      %v193 = vsub.f32 %v173, %v187
      %v194 = vsub.f32 %v174, %v187
      %v195 = vsub.f32 %v175, %v187
      %v196 = vsub.f32 %v176, %v187
      %v197 = vsub.f32 %v177, %v192
      %v198 = vsub.f32 %v178, %v192
      %v199 = vsub.f32 %v179, %v192
      %v200 = vsub.f32 %v180, %v192
      %v201 = vmul.f32 %v193, 1.442695
      %v202 = vpow.pop %v201
      %v203 = vmul.f32 %v194, 1.442695
      %v204 = vpow.pop %v203
      %v205 = vmul.f32 %v195, 1.442695
      %v206 = vpow.pop %v205
      %v207 = vmul.f32 %v196, 1.442695
      %v208 = vpow.pop %v207
      %v209 = vmul.f32 %v197, 1.442695
      %v210 = vpow.pop %v209
      %v211 = vmul.f32 %v198, 1.442695
      %v212 = vpow.pop %v211
      %v213 = vmul.f32 %v199, 1.442695
      %v214 = vpow.pop %v213
      %v215 = vmul.f32 %v200, 1.442695
      %v216 = vpow.pop %v215
      %v217 = vadd.f32 %v202, %v204
      %v218 = vadd.f32 %v217, %v206
      %v219 = vadd.f32 %v218, %v208
      %220 = vadd.xlane.f32.xlu0 %v219
      %v221 = vpop.xlane.xlu0 %220
      %v222 = vadd.f32 %v210, %v212
      %v223 = vadd.f32 %v222, %v214
      %v224 = vadd.f32 %v223, %v216
      %225 = vadd.xlane.f32.xlu0 %v224
      %v226 = vpop.xlane.xlu0 %225
      %v227 = vlaneseq
      %v228 = vand.u32 %v227, 127
      %v229 = vadd.s32 %v228, 128
      %v230 = vadd.s32 %v228, 256
      %v231 = vadd.s32 %v228, 384
      %232 = vset.pattern.permute.xlu0 0
      %233 = vperm.xlu0 %232, %v181
      %v234 = vpop.permute.xlu0 %233
      %235 = vset.pattern.permute.xlu0 0
      %236 = vperm.xlu0 %235, %v182
      %v237 = vpop.permute.xlu0 %236
      %vm238 = vcmp.eq.s32.totalorder %v228, %v234
      %vm239 = vcmp.eq.s32.totalorder %v229, %v234
      %vm240 = vcmp.eq.s32.totalorder %v230, %v234
      %vm241 = vcmp.eq.s32.totalorder %v231, %v234
      %vm242 = vcmp.eq.s32.totalorder %v228, %v237
      %vm243 = vcmp.eq.s32.totalorder %v229, %v237
      %vm244 = vcmp.eq.s32.totalorder %v230, %v237
      %vm245 = vcmp.eq.s32.totalorder %v231, %v237
      %v246 = vsel %vm238, %v173, 0.0
      %v247 = vsel %vm239, %v174, 0.0
      %v248 = vsel %vm240, %v175, 0.0
      %v249 = vsel %vm241, %v176, 0.0
      %v250 = vsel %vm242, %v177, 0.0
      %v251 = vsel %vm243, %v178, 0.0
      %v252 = vsel %vm244, %v179, 0.0
      %v253 = vsel %vm245, %v180, 0.0
      %v254 = vadd.f32 %v246, %v247
      %v255 = vadd.f32 %v254, %v248
      %v256 = vadd.f32 %v255, %v249
      %257 = vadd.xlane.f32.xlu0 %v256
      %v258 = vpop.xlane.xlu0 %257
      %v259 = vadd.f32 %v250, %v251
      %v260 = vadd.f32 %v259, %v252
      %v261 = vadd.f32 %v260, %v253
      %262 = vadd.xlane.f32.xlu0 %v261
      %v263 = vpop.xlane.xlu0 %262
      %vm264 = vcmp.ne.s32.totalorder %v181, 4294967295
      %vm265 = vcmp.ne.s32.totalorder %v182, 4294967295
      %v266 = vlog2.pop %v221
      %v267 = vmul.f32 %v266, 0.6931472
      %v268 = vlog2.pop %v226
      %v269 = vmul.f32 %v268, 0.6931472
      %v270 = vadd.f32 %v187, %v267
      %v271 = vadd.f32 %v192, %v269
      %v272 = vsub.f32 %v270, %v258
      %v273 = vsub.f32 %v271, %v263
      %v274 = vsel %vm264, %v272, 0.0
      %v275 = vsel %vm265, %v273, 0.0
      %v276 = vld [vmem:[#allocation7] sm:$0xff]
      %vm277 = vcmask 7168
      %v278 = vsel %vm277, %v274, 0.0
      %v279 = vsel %vm277, %v275, 0.0
      %v280 = vadd.f32 %v278, %v279
      %281 = vadd.xlane.f32.xlu0 %v280
      %v282 = vpop.xlane.xlu0 %281
      %v283 = vrot.slane %v282, 4
      %v284 = vadd.f32 %v282, %v283
      %v285 = vrot.slane %v284, 2
      %v286 = vadd.f32 %v284, %v285
      %v287 = vrot.slane %v286, 1
      %v288 = vadd.f32 %v286, %v287
      %s289 = vtos %v288
      %v290 = vstv %s289
      %v291 = vadd.f32 %v276, %v290
      %292 = vst [vmem:[#allocation7] sm:$0xff] %v291
      %v293 = vld [vmem:[#allocation9] sm:$0xff]
      %v294 = vsel %vm264, 1, 0
      %v295 = vsel %vm265, 1, 0
      %v296 = vcvt.s32.f32 %v294
      %v297 = vcvt.s32.f32 %v295
      %v298 = vsel %vm277, %v296, 0.0
      %v299 = vsel %vm277, %v297, 0.0
      %v300 = vadd.f32 %v298, %v299
      %301 = vadd.xlane.f32.xlu0 %v300
      %v302 = vpop.xlane.xlu0 %301
      %v303 = vrot.slane %v302, 4
      %v304 = vadd.f32 %v302, %v303
      %v305 = vrot.slane %v304, 2
      %v306 = vadd.f32 %v304, %v305
      %v307 = vrot.slane %v306, 1
      %v308 = vadd.f32 %v306, %v307
      %s309 = vtos %v308
      %v310 = vstv %s309
      %v311 = vadd.f32 %v293, %v310
      %312 = vst [vmem:[#allocation9] sm:$0xff] %v311
    $region38: #{tpu_custom_call.1} parent=1 // pred_fallthru
      _
    // Predicated region
    $region39: #{tpu_custom_call.1} parent=1 // pred_check
      _
    $region40: #{tpu_custom_call.1} parent=1 // pred_check_branch
      %314 = sbr.rel (0) target = $region42
    $region41: #{tpu_custom_call.1} parent=1 // pred_region
      %s316 = ssub.s32 128, 128
      %317 = vsyncadd [#allocation8], %s316
      %s319 = sshll.u32 [#allocation7], 4
      %s320 = int_to_ptr.vmem [resolvable:$true] %s319
      %322 = dma.vmem_to_hbm [thread:$0]  %s320, 128, %s4, [#allocation8]
    $region42: #{tpu_custom_call.1} parent=1 // pred_fallthru
      _
    // Predicated region
    $region43: #{tpu_custom_call.1} parent=1 // pred_check
      _
    $region44: #{tpu_custom_call.1} parent=1 // pred_check_branch
      %324 = sbr.rel (0) target = $region46
    $region45: #{tpu_custom_call.1} parent=1 // pred_region
      %s326 = ssub.s32 128, 128
      %327 = vsyncadd [#allocation10], %s326
      %s329 = sshll.u32 [#allocation9], 4
      %s330 = int_to_ptr.vmem [resolvable:$true] %s329
      %332 = dma.vmem_to_hbm [thread:$0]  %s330, 128, %s5, [#allocation10]
    $region46: #{tpu_custom_call.1} parent=1 // pred_fallthru
      _
    // Predicated region
    $region47: #{tpu_custom_call.1} parent=1 // pred_check
      _
    $region48: #{tpu_custom_call.1} parent=1 // pred_check_branch
      %334 = sbr.rel (0) target = $region50
    $region49: #{tpu_custom_call.1} parent=1 // pred_region
      %335 = dma.done [#allocation8], 128
    $region50: #{tpu_custom_call.1} parent=1 // pred_fallthru
      _
    // Predicated region
    $region51: #{tpu_custom_call.1} parent=1 // pred_check
      _
    $region52: #{tpu_custom_call.1} parent=1 // pred_check_branch
      %337 = sbr.rel (0) target = $region54
    $region53: #{tpu_custom_call.1} parent=1 // pred_region
      %338 = dma.done [#allocation10], 128
    $region54: #{tpu_custom_call.1} parent=1 // pred_fallthru
      _
    %339 = vsyncpa [#allocation8], 1
    %340 = vsyncpa [#allocation10], 1
  %341 = vsyncmov [#allocation3]
  %s342 = vpop.sfrf %341
  %p343 = scmp.eq.s32.totalorder %s342, 0
  %p344 = pneg %p343
  %346 = shalt.err (%p344)
  %s347 = scalar_lea.sflag [#allocation3], 1
  %348 = vsyncmov %s347
  %s349 = vpop.sfrf %348
  %p350 = scmp.eq.s32.totalorder %s349, 0
  %p351 = pneg %p350
  %353 = shalt.err (%p351)
  %s354 = scalar_lea.sflag [#allocation3], 2
  %355 = vsyncmov %s354
  %s356 = vpop.sfrf %355
  %p357 = scmp.eq.s32.totalorder %s356, 0
  %p358 = pneg %p357
  %360 = shalt.err (%p358)
  %s361 = scalar_lea.sflag [#allocation3], 3
  %362 = vsyncmov %s361
  %s363 = vpop.sfrf %362
  %p364 = scmp.eq.s32.totalorder %s363, 0
  %p365 = pneg %p364
  %367 = shalt.err (%p365)
  %s368 = scalar_lea.sflag [#allocation3], 4
  %369 = vsyncmov %s368
  %s370 = vpop.sfrf %369
  %p371 = scmp.eq.s32.totalorder %s370, 0
  %p372 = pneg %p371
  %374 = shalt.err (%p372)
  %s375 = scalar_lea.sflag [#allocation3], 5
  %376 = vsyncmov %s375
  %s377 = vpop.sfrf %376
  %p378 = scmp.eq.s32.totalorder %s377, 0
  %p379 = pneg %p378
  %381 = shalt.err (%p379)
  %s382 = scalar_lea.sflag [#allocation3], 6
  %383 = vsyncmov %s382
  %s384 = vpop.sfrf %383
  %p385 = scmp.eq.s32.totalorder %s384, 0
  %p386 = pneg %p385
  %388 = shalt.err (%p386)
  %s389 = scalar_lea.sflag [#allocation3], 7
  %390 = vsyncmov %s389
  %s391 = vpop.sfrf %390
  %p392 = scmp.eq.s32.totalorder %s391, 0
  %p393 = pneg %p392
  %395 = shalt.err (%p393)
  %s396 = scalar_lea.sflag [#allocation3], 8
  %397 = vsyncmov %s396
  %s398 = vpop.sfrf %397
  %p399 = scmp.eq.s32.totalorder %s398, 0
  %p400 = pneg %p399
  %402 = shalt.err (%p400)
  %s403 = scalar_lea.sflag [#allocation3], 9
  %404 = vsyncmov %s403
  %s405 = vpop.sfrf %404
  %p406 = scmp.eq.s32.totalorder %s405, 0
  %p407 = pneg %p406
  %409 = shalt.err (%p407)
  %s410 = scalar_lea.sflag [#allocation3], 10
  %411 = vsyncmov %s410
  %s412 = vpop.sfrf %411
  %p413 = scmp.eq.s32.totalorder %s412, 0
  %p414 = pneg %p413
  %416 = shalt.err (%p414)
  %s417 = scalar_lea.sflag [#allocation3], 11
  %418 = vsyncmov %s417
  %s419 = vpop.sfrf %418
  %p420 = scmp.eq.s32.totalorder %s419, 0
  %p421 = pneg %p420
  %423 = shalt.err (%p421)
  %s424 = scalar_lea.sflag [#allocation3], 12
  %425 = vsyncmov %s424
  %s426 = vpop.sfrf %425
  %p427 = scmp.eq.s32.totalorder %s426, 0
  %p428 = pneg %p427
  %430 = shalt.err (%p428)
  %s431 = scalar_lea.sflag [#allocation3], 13
  %432 = vsyncmov %s431
  %s433 = vpop.sfrf %432
  %p434 = scmp.eq.s32.totalorder %s433, 0
  %p435 = pneg %p434
  %437 = shalt.err (%p435)
  %s438 = scalar_lea.sflag [#allocation3], 14
  %439 = vsyncmov %s438
  %s440 = vpop.sfrf %439
  %p441 = scmp.eq.s32.totalorder %s440, 0
  %p442 = pneg %p441
  %444 = shalt.err (%p442)
  %s445 = scalar_lea.sflag [#allocation3], 15
  %446 = vsyncmov %s445
  %s447 = vpop.sfrf %446
  %p448 = scmp.eq.s32.totalorder %s447, 0
  %p449 = pneg %p448
  %451 = shalt.err (%p449)
  %s452 = scalar_lea.sflag [#allocation3], 16
  %453 = vsyncmov %s452
  %s454 = vpop.sfrf %453
  %p455 = scmp.eq.s32.totalorder %s454, 0
  %p456 = pneg %p455
  %458 = shalt.err (%p456)
  %s459 = scalar_lea.sflag [#allocation3], 17
  %460 = vsyncmov %s459
  %s461 = vpop.sfrf %460
  %p462 = scmp.eq.s32.totalorder %s461, 0
  %p463 = pneg %p462
  %465 = shalt.err (%p463)
  %s466 = scalar_lea.sflag [#allocation3], 18
  %467 = vsyncmov %s466
  %s468 = vpop.sfrf %467
  %p469 = scmp.eq.s32.totalorder %s468, 0
  %p470 = pneg %p469
  %472 = shalt.err (%p470)
  %s473 = scalar_lea.sflag [#allocation3], 19
  %474 = vsyncmov %s473
  %s475 = vpop.sfrf %474
  %p476 = scmp.eq.s32.totalorder %s475, 0
  %p477 = pneg %p476
  %479 = shalt.err (%p477)
  %s480 = scalar_lea.sflag [#allocation3], 20
  %481 = vsyncmov %s480
  %s482 = vpop.sfrf %481
  %p483 = scmp.eq.s32.totalorder %s482, 0
  %p484 = pneg %p483
  %486 = shalt.err (%p484)
  %s487 = scalar_lea.sflag [#allocation3], 21
  %488 = vsyncmov %s487
  %s489 = vpop.sfrf %488
  %p490 = scmp.eq.s32.totalorder %s489, 0
  %p491 = pneg %p490
  %493 = shalt.err (%p491)
  %s494 = scalar_lea.sflag [#allocation3], 22
  %495 = vsyncmov %s494
  %s496 = vpop.sfrf %495
  %p497 = scmp.eq.s32.totalorder %s496, 0
  %p498 = pneg %p497
  %500 = shalt.err (%p498)
  %s501 = scalar_lea.sflag [#allocation3], 23
  %502 = vsyncmov %s501
  %s503 = vpop.sfrf %502
  %p504 = scmp.eq.s32.totalorder %s503, 0
  %p505 = pneg %p504
  %507 = shalt.err (%p505)
  %s508 = scalar_lea.sflag [#allocation3], 24
  %509 = vsyncmov %s508
  %s510 = vpop.sfrf %509
  %p511 = scmp.eq.s32.totalorder %s510, 0
  %p512 = pneg %p511
  %514 = shalt.err (%p512)
  %s515 = scalar_lea.sflag [#allocation3], 25
  %516 = vsyncmov %s515
  %s517 = vpop.sfrf %516
  %p518 = scmp.eq.s32.totalorder %s517, 0
  %p519 = pneg %p518
  %521 = shalt.err (%p519)
  %s522 = scalar_lea.sflag [#allocation3], 26
  %523 = vsyncmov %s522
  %s524 = vpop.sfrf %523
  %p525 = scmp.eq.s32.totalorder %s524, 0
  %p526 = pneg %p525
  %528 = shalt.err (%p526)
  %s529 = scalar_lea.sflag [#allocation3], 27
  %530 = vsyncmov %s529
  %s531 = vpop.sfrf %530
  %p532 = scmp.eq.s32.totalorder %s531, 0
  %p533 = pneg %p532
  %535 = shalt.err (%p533)
  %s536 = scalar_lea.sflag [#allocation3], 28
  %537 = vsyncmov %s536
  %s538 = vpop.sfrf %537
  %p539 = scmp.eq.s32.totalorder %s538, 0
  %p540 = pneg %p539
  %542 = shalt.err (%p540)
  %s543 = scalar_lea.sflag [#allocation3], 29
  %544 = vsyncmov %s543
  %s545 = vpop.sfrf %544
  %p546 = scmp.eq.s32.totalorder %s545, 0
  %p547 = pneg %p546
  %549 = shalt.err (%p547)
  %s550 = scalar_lea.sflag [#allocation3], 30
  %551 = vsyncmov %s550
  %s552 = vpop.sfrf %551
  %p553 = scmp.eq.s32.totalorder %s552, 0
  %p554 = pneg %p553
  %556 = shalt.err (%p554)
  %s557 = scalar_lea.sflag [#allocation3], 31
  %558 = vsyncmov %s557
  %s559 = vpop.sfrf %558
  %p560 = scmp.eq.s32.totalorder %s559, 0
  %p561 = pneg %p560
  %563 = shalt.err (%p561)

</llo_original>
